<compile_context>
chip_gen: v5e
topology: v5e:2x2
jax: 0.10.0
libtpu: 0.0.40
codegen_flags: <defaults>
</compile_context>

<pallas_src>
import jax
import jax.numpy as jnp
from jax.experimental import pallas as pl
from jax.experimental.pallas import tpu as pltpu

LAYER_SIZE = 128
LANE = 128      # lane width of a vreg
SUBLANE = 8     # f32 sublane count


def _round_up(x, m):
    return ((x + m - 1) // m) * m


def _actor_kernel(bound_ref,
                  x_ref, w1_ref, b1_ref, a1_ref,
                  w2_ref, b2_ref, a2_ref,
                  w3_ref, b3_ref, o_ref):
    """One batch tile of the Actor MLP (bf16 MXU operands, f32 epilogues)."""
    x = x_ref[...].astype(jnp.bfloat16)

    # Linear 1 + PReLU(256)
    h1 = jnp.dot(x, w1_ref[...].astype(jnp.bfloat16),
                 preferred_element_type=jnp.float32) + b1_ref[...]
    h1 = jnp.where(h1 >= 0.0, h1, a1_ref[...] * h1)

    # Linear 2 + PReLU(128)
    h2 = jnp.dot(h1.astype(jnp.bfloat16), w2_ref[...].astype(jnp.bfloat16),
                 preferred_element_type=jnp.float32) + b2_ref[...]
    h2 = jnp.where(h2 >= 0.0, h2, a2_ref[...] * h2)

    # Linear 3 + Tanh, scaled by output_bound (read from SMEM)
    h3 = jnp.dot(h2.astype(jnp.bfloat16), w3_ref[...].astype(jnp.bfloat16),
                 preferred_element_type=jnp.float32) + b3_ref[...]
    o_ref[...] = bound_ref[0, 0] * jnp.tanh(h3)


def actor_forward(params, x, output_bound, *, tm=512):
    """Actor MLP forward: grid over batch tiles, weights resident in VMEM."""
    w1, b1, a1, w2, b2, a2, w3, b3 = params
    batch, in_dim = x.shape
    h1_dim = w1.shape[1]
    h2_dim = w2.shape[1]
    out_dim = w3.shape[1]

    # ---- lane-dense zero padding of narrow feature dims (bit-exact). ----
    in_pad = _round_up(max(in_dim, LANE), LANE)
    out_pad = _round_up(max(out_dim, LANE), LANE)
    if in_pad != in_dim:
        x = jnp.pad(x, ((0, 0), (0, in_pad - in_dim)))
        w1 = jnp.pad(w1, ((0, in_pad - in_dim), (0, 0)))
    if out_pad != out_dim:
        w3 = jnp.pad(w3, ((0, 0), (0, out_pad - out_dim)))
        b3 = jnp.pad(b3, ((0, 0), (0, out_pad - out_dim)))

    # ---- batch tiling: multiple of 8 sublanes, capped for VMEM budget
    # (TM=512 keeps double-buffered x/out tiles + resident weights +
    #  intermediates < ~3 MiB, well under v7x's 32 MiB scoped VMEM). ----
    tm = min(tm, _round_up(batch, SUBLANE))
    tm = _round_up(tm, SUBLANE)
    batch_pad = _round_up(batch, tm)
    if batch_pad != batch:
        x = jnp.pad(x, ((0, batch_pad - batch), (0, 0)))

    bound = jnp.asarray(output_bound, dtype=jnp.float32).reshape(1, 1)

    def row_spec(shape):
        return pl.BlockSpec(shape, lambda i: (i, 0))

    def const_spec(shape):
        return pl.BlockSpec(shape, lambda i: (0, 0))

    out = pl.pallas_call(
        _actor_kernel,
        out_shape=jax.ShapeDtypeStruct((batch_pad, out_pad), jnp.float32),
        grid=(batch_pad // tm,),
        in_specs=[
            pl.BlockSpec((1, 1), lambda i: (0, 0),
                         memory_space=pltpu.MemorySpace.SMEM),  # output_bound
            row_spec((tm, in_pad)),                              # x tile
            const_spec((in_pad, h1_dim)),                        # w1 (resident)
            const_spec((1, h1_dim)),                             # b1
            const_spec((1, h1_dim)),                             # a1
            const_spec((h1_dim, h2_dim)),                        # w2
            const_spec((1, h2_dim)),                             # b2
            const_spec((1, h2_dim)),                             # a2
            const_spec((h2_dim, out_pad)),                       # w3
            const_spec((1, out_pad)),                            # b3
        ],
        out_specs=row_spec((tm, out_pad)),
        compiler_params=pltpu.CompilerParams(
            dimension_semantics=("parallel",)),
    )(bound, x, w1, b1, a1, w2, b2, a2, w3, b3)

    return out[:batch, :out_dim]


def init_actor_params(key, input_dim, output_dim):
    """Deterministic init mirroring PyTorch defaults:
    Linear: U(-1/sqrt(fan_in), 1/sqrt(fan_in)) for weight and bias.
    PReLU:  alpha = 0.25 per channel.
    Weights stored [in, out]; biases / alphas stored [1, out] for broadcasting.
    """
    dims = [(input_dim, 2 * LAYER_SIZE),
            (2 * LAYER_SIZE, LAYER_SIZE),
            (LAYER_SIZE, output_dim)]
    params = []
    keys = jax.random.split(key, 2 * len(dims))
    for i, (fan_in, fan_out) in enumerate(dims):
        bound = 1.0 / (fan_in ** 0.5)
        w = jax.random.uniform(keys[2 * i], (fan_in, fan_out),
                               minval=-bound, maxval=bound, dtype=jnp.float32)
        b = jax.random.uniform(keys[2 * i + 1], (1, fan_out),
                               minval=-bound, maxval=bound, dtype=jnp.float32)
        params.append((w, b))

    (w1, b1), (w2, b2), (w3, b3) = params
    a1 = jnp.full((1, 2 * LAYER_SIZE), 0.25, dtype=jnp.float32)
    a2 = jnp.full((1, LAYER_SIZE), 0.25, dtype=jnp.float32)
    return (w1, b1, a1, w2, b2, a2, w3, b3)


def actor_forward_ref_f32(params, x, output_bound):
    """Pure-JAX f32 reference (exact PyTorch-module semantics)."""
    w1, b1, a1, w2, b2, a2, w3, b3 = params
    h1 = x @ w1 + b1
    h1 = jnp.where(h1 >= 0.0, h1, a1 * h1)
    h2 = h1 @ w2 + b2
    h2 = jnp.where(h2 >= 0.0, h2, a2 * h2)
    h3 = h2 @ w3 + b3
    return output_bound * jnp.tanh(h3)


def actor_forward_ref_bf16(params, x, output_bound):
    """Pure-JAX reference matching the kernel's bf16-MXU / f32-accumulate math."""
    w1, b1, a1, w2, b2, a2, w3, b3 = params
    bf = jnp.bfloat16
    h1 = jnp.dot(x.astype(bf), w1.astype(bf),
                 preferred_element_type=jnp.float32) + b1
    h1 = jnp.where(h1 >= 0.0, h1, a1 * h1)
    h2 = jnp.dot(h1.astype(bf), w2.astype(bf),
                 preferred_element_type=jnp.float32) + b2
    h2 = jnp.where(h2 >= 0.0, h2, a2 * h2)
    h3 = jnp.dot(h2.astype(bf), w3.astype(bf),
                 preferred_element_type=jnp.float32) + b3
    return output_bound * jnp.tanh(h3)


if __name__ == "__main__":
    INPUT_DIM = 16
    OUTPUT_DIM = 4
    OUTPUT_BOUND = 2.0
    BATCH = 2

    key = jax.random.PRNGKey(0)
    pkey, xkey = jax.random.split(key)
    params = init_actor_params(pkey, INPUT_DIM, OUTPUT_DIM)
    x = jax.random.normal(xkey, (BATCH, INPUT_DIM), dtype=jnp.float32)

    out = jax.block_until_ready(actor_forward(params, x, OUTPUT_BOUND))
    assert out.shape == (BATCH, OUTPUT_DIM)

    # Tight check vs a reference using the same bf16-MXU / f32-accumulate math.
    ref_bf16 = actor_forward_ref_bf16(params, x, OUTPUT_BOUND)
    assert jnp.allclose(out, ref_bf16, atol=1e-4, rtol=1e-4), \
        "mismatch vs bf16-matched JAX reference"

    # Loose check vs the exact-f32 PyTorch-semantics reference.
    ref_f32 = actor_forward_ref_f32(params, x, OUTPUT_BOUND)
    assert jnp.allclose(out, ref_f32, atol=5e-2, rtol=5e-2), \
        "mismatch vs f32 JAX reference"

    print("KERNEL_OK")
</pallas_src>

<mosaic_0001>
module attributes {stable_mosaic.version = 11 : i64} {
  func.func @_actor_kernel(%arg0: i32, %arg1: memref<1x1xf32, #tpu.memory_space<smem>>, %arg2: memref<8x128xf32, #tpu.memory_space<vmem>>, %arg3: memref<128x256xf32, #tpu.memory_space<vmem>>, %arg4: memref<1x256xf32, #tpu.memory_space<vmem>>, %arg5: memref<1x256xf32, #tpu.memory_space<vmem>>, %arg6: memref<256x128xf32, #tpu.memory_space<vmem>>, %arg7: memref<1x128xf32, #tpu.memory_space<vmem>>, %arg8: memref<1x128xf32, #tpu.memory_space<vmem>>, %arg9: memref<128x128xf32, #tpu.memory_space<vmem>>, %arg10: memref<1x128xf32, #tpu.memory_space<vmem>>, %arg11: memref<8x128xf32, #tpu.memory_space<vmem>>) attributes {dimension_semantics = [#tpu.dimension_semantics<parallel>], iteration_bounds = array<i64: 1>, scalar_prefetch = 0 : i64, scratch_operands = 0 : i64, tpu.core_type = #tpu.core_type<tc>, window_params = [{transform_indices = @transform_0, window_bounds = array<i64: 1, 1>}, {transform_indices = @transform_1, window_bounds = array<i64: 8, 128>}, {pipeline_mode = #tpu.pipeline_mode<synchronous>, transform_indices = @transform_2, window_bounds = array<i64: 128, 256>}, {pipeline_mode = #tpu.pipeline_mode<synchronous>, transform_indices = @transform_3, window_bounds = array<i64: 1, 256>}, {pipeline_mode = #tpu.pipeline_mode<synchronous>, transform_indices = @transform_4, window_bounds = array<i64: 1, 256>}, {pipeline_mode = #tpu.pipeline_mode<synchronous>, transform_indices = @transform_5, window_bounds = array<i64: 256, 128>}, {pipeline_mode = #tpu.pipeline_mode<synchronous>, transform_indices = @transform_6, window_bounds = array<i64: 1, 128>}, {pipeline_mode = #tpu.pipeline_mode<synchronous>, transform_indices = @transform_7, window_bounds = array<i64: 1, 128>}, {pipeline_mode = #tpu.pipeline_mode<synchronous>, transform_indices = @transform_8, window_bounds = array<i64: 128, 128>}, {pipeline_mode = #tpu.pipeline_mode<synchronous>, transform_indices = @transform_9, window_bounds = array<i64: 1, 128>}, {transform_indices = @transform_10, window_bounds = array<i64: 8, 128>}]} {
    %c0 = arith.constant 0 : index
    %c0_0 = arith.constant 0 : index
    %0 = vector.load %arg2[%c0, %c0_0] : memref<8x128xf32, #tpu.memory_space<vmem>>, vector<8x128xf32>
    %1 = arith.truncf %0 : vector<8x128xf32> to vector<8x128xbf16>
    %c0_1 = arith.constant 0 : index
    %c0_2 = arith.constant 0 : index
    %2 = vector.load %arg3[%c0_1, %c0_2] : memref<128x256xf32, #tpu.memory_space<vmem>>, vector<128x256xf32>
    %3 = arith.truncf %2 : vector<128x256xf32> to vector<128x256xbf16>
    %cst = arith.constant dense<0.000000e+00> : vector<8x256xf32>
    %4 = tpu.matmul %1, %3, %cst {dimension_numbers = #tpu.dot_dimension_numbers<[1], [0], [0], [1], [0, 0, 1, 1], [], []>} : vector<8x128xbf16>, vector<128x256xbf16>, vector<8x256xf32> -> vector<8x256xf32>
    %c0_3 = arith.constant 0 : index
    %c0_4 = arith.constant 0 : index
    %5 = vector.load %arg4[%c0_3, %c0_4] : memref<1x256xf32, #tpu.memory_space<vmem>>, vector<1x256xf32>
    %6 = vector.broadcast %5 : vector<1x256xf32> to vector<8x256xf32>
    %7 = arith.addf %4, %6 : vector<8x256xf32>
    %cst_5 = arith.constant 0.000000e+00 : f32
    %8 = vector.broadcast %cst_5 : f32 to vector<8x256xf32>
    %9 = arith.cmpf oge, %7, %8 : vector<8x256xf32>
    %c0_6 = arith.constant 0 : index
    %c0_7 = arith.constant 0 : index
    %10 = vector.load %arg5[%c0_6, %c0_7] : memref<1x256xf32, #tpu.memory_space<vmem>>, vector<1x256xf32>
    %11 = vector.broadcast %10 : vector<1x256xf32> to vector<8x256xf32>
    %12 = arith.mulf %11, %7 : vector<8x256xf32>
    %13 = arith.select %9, %7, %12 : vector<8x256xi1>, vector<8x256xf32>
    %14 = arith.truncf %13 : vector<8x256xf32> to vector<8x256xbf16>
    %c0_8 = arith.constant 0 : index
    %c0_9 = arith.constant 0 : index
    %15 = vector.load %arg6[%c0_8, %c0_9] : memref<256x128xf32, #tpu.memory_space<vmem>>, vector<256x128xf32>
    %16 = arith.truncf %15 : vector<256x128xf32> to vector<256x128xbf16>
    %cst_10 = arith.constant dense<0.000000e+00> : vector<8x128xf32>
    %17 = tpu.matmul %14, %16, %cst_10 {dimension_numbers = #tpu.dot_dimension_numbers<[1], [0], [0], [1], [0, 0, 1, 1], [], []>} : vector<8x256xbf16>, vector<256x128xbf16>, vector<8x128xf32> -> vector<8x128xf32>
    %c0_11 = arith.constant 0 : index
    %c0_12 = arith.constant 0 : index
    %18 = vector.load %arg7[%c0_11, %c0_12] : memref<1x128xf32, #tpu.memory_space<vmem>>, vector<1x128xf32>
    %19 = vector.broadcast %18 : vector<1x128xf32> to vector<8x128xf32>
    %20 = arith.addf %17, %19 : vector<8x128xf32>
    %cst_13 = arith.constant 0.000000e+00 : f32
    %21 = vector.broadcast %cst_13 : f32 to vector<8x128xf32>
    %22 = arith.cmpf oge, %20, %21 : vector<8x128xf32>
    %c0_14 = arith.constant 0 : index
    %c0_15 = arith.constant 0 : index
    %23 = vector.load %arg8[%c0_14, %c0_15] : memref<1x128xf32, #tpu.memory_space<vmem>>, vector<1x128xf32>
    %24 = vector.broadcast %23 : vector<1x128xf32> to vector<8x128xf32>
    %25 = arith.mulf %24, %20 : vector<8x128xf32>
    %26 = arith.select %22, %20, %25 : vector<8x128xi1>, vector<8x128xf32>
    %27 = arith.truncf %26 : vector<8x128xf32> to vector<8x128xbf16>
    %c0_16 = arith.constant 0 : index
    %c0_17 = arith.constant 0 : index
    %28 = vector.load %arg9[%c0_16, %c0_17] : memref<128x128xf32, #tpu.memory_space<vmem>>, vector<128x128xf32>
    %29 = arith.truncf %28 : vector<128x128xf32> to vector<128x128xbf16>
    %cst_18 = arith.constant dense<0.000000e+00> : vector<8x128xf32>
    %30 = tpu.matmul %27, %29, %cst_18 {dimension_numbers = #tpu.dot_dimension_numbers<[1], [0], [0], [1], [0, 0, 1, 1], [], []>} : vector<8x128xbf16>, vector<128x128xbf16>, vector<8x128xf32> -> vector<8x128xf32>
    %c0_19 = arith.constant 0 : index
    %c0_20 = arith.constant 0 : index
    %31 = vector.load %arg10[%c0_19, %c0_20] : memref<1x128xf32, #tpu.memory_space<vmem>>, vector<1x128xf32>
    %32 = vector.broadcast %31 : vector<1x128xf32> to vector<8x128xf32>
    %33 = arith.addf %30, %32 : vector<8x128xf32>
    %c0_21 = arith.constant 0 : index
    %c0_22 = arith.constant 0 : index
    %34 = memref.load %arg1[%c0_21, %c0_22] : memref<1x1xf32, #tpu.memory_space<smem>>
    %35 = math.tanh %33 : vector<8x128xf32>
    %36 = vector.broadcast %34 : f32 to vector<8x128xf32>
    %37 = arith.mulf %36, %35 : vector<8x128xf32>
    %c0_23 = arith.constant 0 : index
    %c0_24 = arith.constant 0 : index
    %38 = vector.load %arg11[%c0_23, %c0_24] : memref<8x128xf32, #tpu.memory_space<vmem>>, vector<8x128xf32>
    tpu.vector_store %arg11[%c0_23, %c0_24], %37 {strides = array<i32>} : memref<8x128xf32, #tpu.memory_space<vmem>>, vector<8x128xf32>,
    return
  }
  func.func @transform_0(%arg0: i32) -> (i32, i32) {
    %c0_i32 = arith.constant 0 : i32
    %c0_i32_0 = arith.constant 0 : i32
    %c0_i32_1 = arith.constant 0 : i32
    return %c0_i32, %c0_i32_0 : i32, i32
  }
  func.func @transform_1(%arg0: i32) -> (i32, i32) {
    %c0_i32 = arith.constant 0 : i32
    %c0_i32_0 = arith.constant 0 : i32
    return %arg0, %c0_i32 : i32, i32
  }
  func.func @transform_2(%arg0: i32) -> (i32, i32) {
    %c0_i32 = arith.constant 0 : i32
    %c0_i32_0 = arith.constant 0 : i32
    %c0_i32_1 = arith.constant 0 : i32
    return %c0_i32, %c0_i32_0 : i32, i32
  }
  func.func @transform_3(%arg0: i32) -> (i32, i32) {
    %c0_i32 = arith.constant 0 : i32
    %c0_i32_0 = arith.constant 0 : i32
    %c0_i32_1 = arith.constant 0 : i32
    return %c0_i32, %c0_i32_0 : i32, i32
  }
  func.func @transform_4(%arg0: i32) -> (i32, i32) {
    %c0_i32 = arith.constant 0 : i32
    %c0_i32_0 = arith.constant 0 : i32
    %c0_i32_1 = arith.constant 0 : i32
    return %c0_i32, %c0_i32_0 : i32, i32
  }
  func.func @transform_5(%arg0: i32) -> (i32, i32) {
    %c0_i32 = arith.constant 0 : i32
    %c0_i32_0 = arith.constant 0 : i32
    %c0_i32_1 = arith.constant 0 : i32
    return %c0_i32, %c0_i32_0 : i32, i32
  }
  func.func @transform_6(%arg0: i32) -> (i32, i32) {
    %c0_i32 = arith.constant 0 : i32
    %c0_i32_0 = arith.constant 0 : i32
    %c0_i32_1 = arith.constant 0 : i32
    return %c0_i32, %c0_i32_0 : i32, i32
  }
  func.func @transform_7(%arg0: i32) -> (i32, i32) {
    %c0_i32 = arith.constant 0 : i32
    %c0_i32_0 = arith.constant 0 : i32
    %c0_i32_1 = arith.constant 0 : i32
    return %c0_i32, %c0_i32_0 : i32, i32
  }
  func.func @transform_8(%arg0: i32) -> (i32, i32) {
    %c0_i32 = arith.constant 0 : i32
    %c0_i32_0 = arith.constant 0 : i32
    %c0_i32_1 = arith.constant 0 : i32
    return %c0_i32, %c0_i32_0 : i32, i32
  }
  func.func @transform_9(%arg0: i32) -> (i32, i32) {
    %c0_i32 = arith.constant 0 : i32
    %c0_i32_0 = arith.constant 0 : i32
    %c0_i32_1 = arith.constant 0 : i32
    return %c0_i32, %c0_i32_0 : i32, i32
  }
  func.func @transform_10(%arg0: i32) -> (i32, i32) {
    %c0_i32 = arith.constant 0 : i32
    %c0_i32_0 = arith.constant 0 : i32
    return %arg0, %c0_i32 : i32, i32
  }
}

</mosaic_0001>

<llo_original>
// kernel: tpu_custom_call.1
$region0: #{tpu_custom_call.1}
  #allocation0 [shape = 'u32[]', space=smem, size = 0x4, offset = 0x4, fixed_abs, tag = 'smem constant byte address 0x4 - core index']
  #allocation1 [shape = 'u32[72,128]{1,0:T(1,128)}', space=vmem, size = 0x9000, scoped, tag = 'internal scratch']
  #allocation2 [shape = 'f32[1,1]{1,0:T(1,128)S(6)}', space=smem, size = 0x200, scoped, tag = 'scoped memory for tpu_custom_call.1']
  %s0 = inlined_call_operand.<no memory space> [shape: f32[1,1], index: 0, kind: input, shape index: {}]
  %s1 = inlined_call_operand.hbm [shape: f32[8,128], index: 1, kind: input, shape index: {}]
  %s2 = inlined_call_operand.hbm [shape: f32[128,256], index: 2, kind: input, shape index: {}]
  %s3 = inlined_call_operand.vmem [shape: f32[1,256], index: 3, kind: input, shape index: {}]
  %s4 = inlined_call_operand.vmem [shape: f32[1,256], index: 4, kind: input, shape index: {}]
  %s5 = inlined_call_operand.hbm [shape: f32[256,128], index: 5, kind: input, shape index: {}]
  %s6 = inlined_call_operand.vmem [shape: f32[1,128], index: 6, kind: input, shape index: {}]
  %s7 = inlined_call_operand.vmem [shape: f32[1,128], index: 7, kind: input, shape index: {}]
  %s8 = inlined_call_operand.hbm [shape: f32[128,128], index: 8, kind: input, shape index: {}]
  %s9 = inlined_call_operand.vmem [shape: f32[1,128], index: 9, kind: input, shape index: {}]
  %s10 = inlined_call_operand.hbm [shape: f32[8,128], index: 10, kind: output, shape index: {}]
  %s11 = sld [smem:[#allocation0]]
  $region66: #{tpu_custom_call.1} parent=0
    _
  %s13 = ssub.s32 1, %s11
  %s14 = scalar_select 0, %s13, %s11
  %15 = sst [smem:[#allocation2]] %s0
  $region1: #{tpu_custom_call.1} parent=0
    #allocation3 [shape = 'u8[4096]{0}', space=vmem, size = 0x1000, scoped, tag = 'input window, operand 1, single buffered']
    #allocation4 [shape = 's32[1]{0}', space=sflag, size = 0x4, scoped, tag = 'scoped memory for tpu_custom_call.1']
    #allocation5 [shape = 's32[1]{0}', space=sflag, size = 0x4, scoped, tag = 'scoped memory for tpu_custom_call.1']
    #allocation6 [shape = 'u8[131072]{0}', space=vmem, size = 0x20000, scoped, tag = 'input window, operand 2, single buffered']
    #allocation7 [shape = 's32[1]{0}', space=sflag, size = 0x4, scoped, tag = 'scoped memory for tpu_custom_call.1']
    #allocation8 [shape = 'u8[131072]{0}', space=vmem, size = 0x20000, scoped, tag = 'input window, operand 5, single buffered']
    #allocation9 [shape = 'u8[65536]{0}', space=vmem, size = 0x10000, scoped, tag = 'input window, operand 8, single buffered']
    #allocation10 [shape = 's32[1]{0}', space=sflag, size = 0x4, scoped, tag = 'scoped memory for tpu_custom_call.1']
    #allocation11 [shape = 'u8[4096]{0}', space=vmem, size = 0x1000, scoped, tag = 'output window, operand 0, single buffered']
    %16 = vsyncpa [#allocation4], 0
    %17 = vsyncpa [#allocation7], 0
    %18 = vsyncpa [#allocation10], 0
    %19 = vsyncpa [#allocation5], 0
    // Predicated region
    $region2: #{tpu_custom_call.1} parent=1 // pred_check
      _
    $region3: #{tpu_custom_call.1} parent=1 // pred_check_branch
      %21 = sbr.rel (0) target = $region5
    $region4: #{tpu_custom_call.1} parent=1 // pred_region
      _
    $region5: #{tpu_custom_call.1} parent=1 // pred_fallthru
      _
    // Predicated region
    $region6: #{tpu_custom_call.1} parent=1 // pred_check
      _
    $region7: #{tpu_custom_call.1} parent=1 // pred_check_branch
      %23 = sbr.rel (0) target = $region9
    $region8: #{tpu_custom_call.1} parent=1 // pred_region
      %25 = vsyncadd [#allocation4], 0
      %s27 = sshll.u32 %s1, 4
      %s28 = int_to_ptr.hbm [resolvable:$true] %s27
      %s29 = sshll.u32 [#allocation3], 4
      %s30 = int_to_ptr.vmem [resolvable:$true] %s29
      %32 = dma.hbm_to_vmem [thread:$0]  %s28, 128, %s30, [#allocation4]
    $region9: #{tpu_custom_call.1} parent=1 // pred_fallthru
      _
    // Predicated region
    $region10: #{tpu_custom_call.1} parent=1 // pred_check
      _
    $region11: #{tpu_custom_call.1} parent=1 // pred_check_branch
      %34 = sbr.rel (0) target = $region13
    $region12: #{tpu_custom_call.1} parent=1 // pred_region
      %36 = vsyncadd [#allocation7], 0
      %s37 = sshll.u32 %s2, 4
      %s38 = int_to_ptr.hbm [resolvable:$true] %s37
      %s39 = sshll.u32 [#allocation6], 4
      %s40 = int_to_ptr.vmem [resolvable:$true] %s39
      %45 = dma.hbm_to_vmem [thread:$0]  %s38, 4096, %s40, [#allocation7], 256, 256, 16
    $region13: #{tpu_custom_call.1} parent=1 // pred_fallthru
      _
    // Predicated region
    $region14: #{tpu_custom_call.1} parent=1 // pred_check
      _
    $region15: #{tpu_custom_call.1} parent=1 // pred_check_branch
      %47 = sbr.rel (0) target = $region17
    $region16: #{tpu_custom_call.1} parent=1 // pred_region
      _
    $region17: #{tpu_custom_call.1} parent=1 // pred_fallthru
      _
    // Predicated region
    $region18: #{tpu_custom_call.1} parent=1 // pred_check
      _
    $region19: #{tpu_custom_call.1} parent=1 // pred_check_branch
      %49 = sbr.rel (0) target = $region21
    $region20: #{tpu_custom_call.1} parent=1 // pred_region
      _
    $region21: #{tpu_custom_call.1} parent=1 // pred_fallthru
      _
    // Predicated region
    $region22: #{tpu_custom_call.1} parent=1 // pred_check
      _
    $region23: #{tpu_custom_call.1} parent=1 // pred_check_branch
      %51 = sbr.rel (0) target = $region25
    $region24: #{tpu_custom_call.1} parent=1 // pred_region
      %53 = vsyncadd [#allocation7], 0
      %s54 = sshll.u32 %s5, 4
      %s55 = int_to_ptr.hbm [resolvable:$true] %s54
      %s56 = sshll.u32 [#allocation8], 4
      %s57 = int_to_ptr.vmem [resolvable:$true] %s56
      %62 = dma.hbm_to_vmem [thread:$0]  %s55, 4096, %s57, [#allocation7], 128, 128, 8
    $region25: #{tpu_custom_call.1} parent=1 // pred_fallthru
      _
    // Predicated region
    $region26: #{tpu_custom_call.1} parent=1 // pred_check
      _
    $region27: #{tpu_custom_call.1} parent=1 // pred_check_branch
      %64 = sbr.rel (0) target = $region29
    $region28: #{tpu_custom_call.1} parent=1 // pred_region
      _
    $region29: #{tpu_custom_call.1} parent=1 // pred_fallthru
      _
    // Predicated region
    $region30: #{tpu_custom_call.1} parent=1 // pred_check
      _
    $region31: #{tpu_custom_call.1} parent=1 // pred_check_branch
      %66 = sbr.rel (0) target = $region33
    $region32: #{tpu_custom_call.1} parent=1 // pred_region
      _
    $region33: #{tpu_custom_call.1} parent=1 // pred_fallthru
      _
    // Predicated region
    $region34: #{tpu_custom_call.1} parent=1 // pred_check
      _
    $region35: #{tpu_custom_call.1} parent=1 // pred_check_branch
      %68 = sbr.rel (0) target = $region37
    $region36: #{tpu_custom_call.1} parent=1 // pred_region
      %70 = vsyncadd [#allocation10], 0
      %s71 = sshll.u32 %s8, 4
      %s72 = int_to_ptr.hbm [resolvable:$true] %s71
      %s73 = sshll.u32 [#allocation9], 4
      %s74 = int_to_ptr.vmem [resolvable:$true] %s73
      %79 = dma.hbm_to_vmem [thread:$0]  %s72, 2048, %s74, [#allocation10], 128, 128, 8
    $region37: #{tpu_custom_call.1} parent=1 // pred_fallthru
      _
    // Predicated region
    $region38: #{tpu_custom_call.1} parent=1 // pred_check
      _
    $region39: #{tpu_custom_call.1} parent=1 // pred_check_branch
      %81 = sbr.rel (0) target = $region41
    $region40: #{tpu_custom_call.1} parent=1 // pred_region
      _
    $region41: #{tpu_custom_call.1} parent=1 // pred_fallthru
      _
    // Predicated region
    $region42: #{tpu_custom_call.1} parent=1 // pred_check
      _
    $region43: #{tpu_custom_call.1} parent=1 // pred_check_branch
      %83 = sbr.rel (0) target = $region45
    $region44: #{tpu_custom_call.1} parent=1 // pred_region
      %85 = dma.done [#allocation4], 128
    $region45: #{tpu_custom_call.1} parent=1 // pred_fallthru
      _
    // Predicated region
    $region46: #{tpu_custom_call.1} parent=1 // pred_check
      _
    $region47: #{tpu_custom_call.1} parent=1 // pred_check_branch
      %87 = sbr.rel (0) target = $region49
    $region48: #{tpu_custom_call.1} parent=1 // pred_region
      %89 = dma.done [#allocation7], 4096
    $region49: #{tpu_custom_call.1} parent=1 // pred_fallthru
      _
    // Predicated region
    $region50: #{tpu_custom_call.1} parent=1 // pred_check
      _
    $region51: #{tpu_custom_call.1} parent=1 // pred_check_branch
      %91 = sbr.rel (0) target = $region53
    $region52: #{tpu_custom_call.1} parent=1 // pred_region
      %93 = dma.done [#allocation7], 4096
    $region53: #{tpu_custom_call.1} parent=1 // pred_fallthru
      _
    // Predicated region
    $region54: #{tpu_custom_call.1} parent=1 // pred_check
      _
    $region55: #{tpu_custom_call.1} parent=1 // pred_check_branch
      %95 = sbr.rel (0) target = $region57
    $region56: #{tpu_custom_call.1} parent=1 // pred_region
      %97 = dma.done [#allocation10], 2048
    $region57: #{tpu_custom_call.1} parent=1 // pred_fallthru
      _
    %v98 = vld [vmem:[#allocation3] sm:$0xff]
    %v99 = vpack.c.bf16 %v98, %v98
    %v100 = vld [vmem:[#allocation6] sm:$0xff]
    %v101 = vld [vmem:[#allocation6 + $0x8] sm:$0xff]
    %v102 = vld [vmem:[#allocation6 + $0x10] sm:$0xff]
    %v103 = vld [vmem:[#allocation6 + $0x18] sm:$0xff]
    %v104 = vld [vmem:[#allocation6 + $0x20] sm:$0xff]
    %v105 = vld [vmem:[#allocation6 + $0x28] sm:$0xff]
    %v106 = vld [vmem:[#allocation6 + $0x30] sm:$0xff]
    %v107 = vld [vmem:[#allocation6 + $0x38] sm:$0xff]
    %v108 = vld [vmem:[#allocation6 + $0x40] sm:$0xff]
    %v109 = vld [vmem:[#allocation6 + $0x48] sm:$0xff]
    %v110 = vld [vmem:[#allocation6 + $0x50] sm:$0xff]
    %v111 = vld [vmem:[#allocation6 + $0x58] sm:$0xff]
    %v112 = vld [vmem:[#allocation6 + $0x60] sm:$0xff]
    %v113 = vld [vmem:[#allocation6 + $0x68] sm:$0xff]
    %v114 = vld [vmem:[#allocation6 + $0x70] sm:$0xff]
    %v115 = vld [vmem:[#allocation6 + $0x78] sm:$0xff]
    %v116 = vld [vmem:[#allocation6 + $0x80] sm:$0xff]
    %v117 = vld [vmem:[#allocation6 + $0x88] sm:$0xff]
    %v118 = vld [vmem:[#allocation6 + $0x90] sm:$0xff]
    %v119 = vld [vmem:[#allocation6 + $0x98] sm:$0xff]
    %v120 = vld [vmem:[#allocation6 + $0xa0] sm:$0xff]
    %v121 = vld [vmem:[#allocation6 + $0xa8] sm:$0xff]
    %v122 = vld [vmem:[#allocation6 + $0xb0] sm:$0xff]
    %v123 = vld [vmem:[#allocation6 + $0xb8] sm:$0xff]
    %v124 = vld [vmem:[#allocation6 + $0xc0] sm:$0xff]
    %v125 = vld [vmem:[#allocation6 + $0xc8] sm:$0xff]
    %v126 = vld [vmem:[#allocation6 + $0xd0] sm:$0xff]
    %v127 = vld [vmem:[#allocation6 + $0xd8] sm:$0xff]
    %v128 = vld [vmem:[#allocation6 + $0xe0] sm:$0xff]
    %v129 = vld [vmem:[#allocation6 + $0xe8] sm:$0xff]
    %v130 = vld [vmem:[#allocation6 + $0xf0] sm:$0xff]
    %v131 = vld [vmem:[#allocation6 + $0xf8] sm:$0xff]
    %v132 = vpack.c.bf16 %v102, %v100
    %v133 = vpack.c.bf16 %v103, %v101
    %v134 = vpack.c.bf16 %v106, %v104
    %v135 = vpack.c.bf16 %v107, %v105
    %v136 = vpack.c.bf16 %v110, %v108
    %v137 = vpack.c.bf16 %v111, %v109
    %v138 = vpack.c.bf16 %v114, %v112
    %v139 = vpack.c.bf16 %v115, %v113
    %v140 = vpack.c.bf16 %v118, %v116
    %v141 = vpack.c.bf16 %v119, %v117
    %v142 = vpack.c.bf16 %v122, %v120
    %v143 = vpack.c.bf16 %v123, %v121
    %v144 = vpack.c.bf16 %v126, %v124
    %v145 = vpack.c.bf16 %v127, %v125
    %v146 = vpack.c.bf16 %v130, %v128
    %v147 = vpack.c.bf16 %v131, %v129
    %v148 = vld [vmem:[%s3] sm:$0x3]
    %v150 = vperm.slane %v148, 0
    %v151 = vperm.slane %v148, 1
    %154 = vmatpush.bf16.msra.mxu0 %v146
    %155 = vmatpush.bf16.msra.mxu0 %v144
    %156 = vmatpush.bf16.msra.mxu0 %v142
    %157 = vmatpush.bf16.msra.mxu0 %v140
    %158 = vmatpush.bf16.msra.mxu0 %v138
    %159 = vmatpush.bf16.msra.mxu0 %v136
    %160 = vmatpush.bf16.msra.mxu0 %v134
    %161 = vmatpush.bf16.msra.mxu0 %v132
    %162 = vmatmul.bf16.gmra.mxu0 %v99
    %v163 = vpop.f32.mrf.mxu0
    %v164 = vadd.f32 %v150, %v163
    %v165 = vpop.f32.mrf.mxu0
    %166 = vdwg.mxu0
    %167 = vmatpush.bf16.msra.mxu0 %v147
    %168 = vmatpush.bf16.msra.mxu0 %v145
    %169 = vmatpush.bf16.msra.mxu0 %v143
    %170 = vmatpush.bf16.msra.mxu0 %v141
    %171 = vmatpush.bf16.msra.mxu0 %v139
    %172 = vmatpush.bf16.msra.mxu0 %v137
    %173 = vmatpush.bf16.msra.mxu0 %v135
    %174 = vmatpush.bf16.msra.mxu0 %v133
    %175 = vmatmul.bf16.gmra.mxu0 %v99
    %v176 = vpop.f32.mrf.mxu0
    %v177 = vadd.f32 %v151, %v176
    %v178 = vpop.f32.mrf.mxu0
    %179 = vdwg.mxu0
    %vm180 = vcmp.ge.f32.partialorder %v164, 0.0
    %vm181 = vcmp.ge.f32.partialorder %v177, 0.0
    %v182 = vld [vmem:[%s4] sm:$0x3]
    %v184 = vperm.slane %v182, 0
    %v185 = vperm.slane %v182, 1
    %v188 = vmul.f32 %v184, %v164
    %v189 = vmul.f32 %v185, %v177
    %v190 = vsel %vm180, %v164, %v188
    %v191 = vsel %vm181, %v177, %v189
    %v192 = vpack.c.bf16 %v190, %v190
    %v193 = vpack.c.bf16 %v191, %v191
    %v194 = vld [vmem:[#allocation8] sm:$0xff]
    %v195 = vld [vmem:[#allocation8 + $0x8] sm:$0xff]
    %v196 = vld [vmem:[#allocation8 + $0x10] sm:$0xff]
    %v197 = vld [vmem:[#allocation8 + $0x18] sm:$0xff]
    %v198 = vld [vmem:[#allocation8 + $0x20] sm:$0xff]
    %v199 = vld [vmem:[#allocation8 + $0x28] sm:$0xff]
    %v200 = vld [vmem:[#allocation8 + $0x30] sm:$0xff]
    %v201 = vld [vmem:[#allocation8 + $0x38] sm:$0xff]
    %v202 = vld [vmem:[#allocation8 + $0x40] sm:$0xff]
    %v203 = vld [vmem:[#allocation8 + $0x48] sm:$0xff]
    %v204 = vld [vmem:[#allocation8 + $0x50] sm:$0xff]
    %v205 = vld [vmem:[#allocation8 + $0x58] sm:$0xff]
    %v206 = vld [vmem:[#allocation8 + $0x60] sm:$0xff]
    %v207 = vld [vmem:[#allocation8 + $0x68] sm:$0xff]
    %v208 = vld [vmem:[#allocation8 + $0x70] sm:$0xff]
    %v209 = vld [vmem:[#allocation8 + $0x78] sm:$0xff]
    %v210 = vld [vmem:[#allocation8 + $0x80] sm:$0xff]
    %v211 = vld [vmem:[#allocation8 + $0x88] sm:$0xff]
    %v212 = vld [vmem:[#allocation8 + $0x90] sm:$0xff]
    %v213 = vld [vmem:[#allocation8 + $0x98] sm:$0xff]
    %v214 = vld [vmem:[#allocation8 + $0xa0] sm:$0xff]
    %v215 = vld [vmem:[#allocation8 + $0xa8] sm:$0xff]
    %v216 = vld [vmem:[#allocation8 + $0xb0] sm:$0xff]
    %v217 = vld [vmem:[#allocation8 + $0xb8] sm:$0xff]
    %v218 = vld [vmem:[#allocation8 + $0xc0] sm:$0xff]
    %v219 = vld [vmem:[#allocation8 + $0xc8] sm:$0xff]
    %v220 = vld [vmem:[#allocation8 + $0xd0] sm:$0xff]
    %v221 = vld [vmem:[#allocation8 + $0xd8] sm:$0xff]
    %v222 = vld [vmem:[#allocation8 + $0xe0] sm:$0xff]
    %v223 = vld [vmem:[#allocation8 + $0xe8] sm:$0xff]
    %v224 = vld [vmem:[#allocation8 + $0xf0] sm:$0xff]
    %v225 = vld [vmem:[#allocation8 + $0xf8] sm:$0xff]
    %v226 = vpack.c.bf16 %v195, %v194
    %v227 = vpack.c.bf16 %v197, %v196
    %v228 = vpack.c.bf16 %v199, %v198
    %v229 = vpack.c.bf16 %v201, %v200
    %v230 = vpack.c.bf16 %v203, %v202
    %v231 = vpack.c.bf16 %v205, %v204
    %v232 = vpack.c.bf16 %v207, %v206
    %v233 = vpack.c.bf16 %v209, %v208
    %v234 = vpack.c.bf16 %v211, %v210
    %v235 = vpack.c.bf16 %v213, %v212
    %v236 = vpack.c.bf16 %v215, %v214
    %v237 = vpack.c.bf16 %v217, %v216
    %v238 = vpack.c.bf16 %v219, %v218
    %v239 = vpack.c.bf16 %v221, %v220
    %v240 = vpack.c.bf16 %v223, %v222
    %v241 = vpack.c.bf16 %v225, %v224
    %v242 = vld [vmem:[%s6] sm:$0x1]
    %v244 = vperm.slane %v242, 0
    %246 = vmatpush.bf16.msra.mxu0 %v233
    %247 = vmatpush.bf16.msra.mxu0 %v232
    %248 = vmatpush.bf16.msra.mxu0 %v231
    %249 = vmatpush.bf16.msra.mxu0 %v230
    %250 = vmatpush.bf16.msra.mxu0 %v229
    %251 = vmatpush.bf16.msra.mxu0 %v228
    %252 = vmatpush.bf16.msra.mxu0 %v227
    %253 = vmatpush.bf16.msra.mxu0 %v226
    %254 = vmatmul.bf16.gmra.mxu0 %v192
    %v255 = vpop.f32.mrf.mxu0
    %v256 = vadd.f32 %v244, %v255
    %v257 = vpop.f32.mrf.mxu0
    %258 = vdwg.mxu0
    %259 = vmatpush.bf16.msra.mxu0 %v241
    %260 = vmatpush.bf16.msra.mxu0 %v240
    %261 = vmatpush.bf16.msra.mxu0 %v239
    %262 = vmatpush.bf16.msra.mxu0 %v238
    %263 = vmatpush.bf16.msra.mxu0 %v237
    %264 = vmatpush.bf16.msra.mxu0 %v236
    %265 = vmatpush.bf16.msra.mxu0 %v235
    %266 = vmatpush.bf16.msra.mxu0 %v234
    %267 = vmatmul.bf16.gmra.mxu0 %v193
    %v268 = vpop.f32.mrf.mxu0
    %v269 = vadd.f32 %v256, %v268
    %v270 = vpop.f32.mrf.mxu0
    %271 = vdwg.mxu0
    %vm272 = vcmp.ge.f32.partialorder %v269, 0.0
    %v273 = vld [vmem:[%s7] sm:$0x1]
    %v275 = vperm.slane %v273, 0
    %v277 = vmul.f32 %v275, %v269
    %v278 = vsel %vm272, %v269, %v277
    %v279 = vpack.c.bf16 %v278, %v278
    %v280 = vld [vmem:[#allocation9] sm:$0xff]
    %v281 = vld [vmem:[#allocation9 + $0x8] sm:$0xff]
    %v282 = vld [vmem:[#allocation9 + $0x10] sm:$0xff]
    %v283 = vld [vmem:[#allocation9 + $0x18] sm:$0xff]
    %v284 = vld [vmem:[#allocation9 + $0x20] sm:$0xff]
    %v285 = vld [vmem:[#allocation9 + $0x28] sm:$0xff]
    %v286 = vld [vmem:[#allocation9 + $0x30] sm:$0xff]
    %v287 = vld [vmem:[#allocation9 + $0x38] sm:$0xff]
    %v288 = vld [vmem:[#allocation9 + $0x40] sm:$0xff]
    %v289 = vld [vmem:[#allocation9 + $0x48] sm:$0xff]
    %v290 = vld [vmem:[#allocation9 + $0x50] sm:$0xff]
    %v291 = vld [vmem:[#allocation9 + $0x58] sm:$0xff]
    %v292 = vld [vmem:[#allocation9 + $0x60] sm:$0xff]
    %v293 = vld [vmem:[#allocation9 + $0x68] sm:$0xff]
    %v294 = vld [vmem:[#allocation9 + $0x70] sm:$0xff]
    %v295 = vld [vmem:[#allocation9 + $0x78] sm:$0xff]
    %v296 = vpack.c.bf16 %v281, %v280
    %v297 = vpack.c.bf16 %v283, %v282
    %v298 = vpack.c.bf16 %v285, %v284
    %v299 = vpack.c.bf16 %v287, %v286
    %v300 = vpack.c.bf16 %v289, %v288
    %v301 = vpack.c.bf16 %v291, %v290
    %v302 = vpack.c.bf16 %v293, %v292
    %v303 = vpack.c.bf16 %v295, %v294
    %v304 = vld [vmem:[%s9] sm:$0x1]
    %v306 = vperm.slane %v304, 0
    %308 = vmatpush.bf16.msra.mxu0 %v303
    %309 = vmatpush.bf16.msra.mxu0 %v302
    %310 = vmatpush.bf16.msra.mxu0 %v301
    %311 = vmatpush.bf16.msra.mxu0 %v300
    %312 = vmatpush.bf16.msra.mxu0 %v299
    %313 = vmatpush.bf16.msra.mxu0 %v298
    %314 = vmatpush.bf16.msra.mxu0 %v297
    %315 = vmatpush.bf16.msra.mxu0 %v296
    %316 = vmatmul.bf16.gmra.mxu0 %v279
    %v317 = vpop.f32.mrf.mxu0
    %v318 = vadd.f32 %v306, %v317
    %v319 = vpop.f32.mrf.mxu0
    %320 = vdwg.mxu0
    %s321 = sld [smem:[#allocation2]]
    %v322 = vtanh.pop %v318
    %v323 = vstv %s321
    %v324 = vmul.f32 %v323, %v322
    %325 = vst [vmem:[#allocation11] sm:$0xff] %v324
    // Predicated region
    $region58: #{tpu_custom_call.1} parent=1 // pred_check
      _
    $region59: #{tpu_custom_call.1} parent=1 // pred_check_branch
      %327 = sbr.rel (0) target = $region61
    $region60: #{tpu_custom_call.1} parent=1 // pred_region
      %329 = vsyncadd [#allocation5], 0
      %s331 = sshll.u32 [#allocation11], 4
      %s332 = int_to_ptr.vmem [resolvable:$true] %s331
      %s333 = sshll.u32 %s10, 4
      %s334 = int_to_ptr.hbm [resolvable:$true] %s333
      %336 = dma.vmem_to_hbm [thread:$0]  %s332, 128, %s334, [#allocation5]
    $region61: #{tpu_custom_call.1} parent=1 // pred_fallthru
      _
    // Predicated region
    $region62: #{tpu_custom_call.1} parent=1 // pred_check
      _
    $region63: #{tpu_custom_call.1} parent=1 // pred_check_branch
      %338 = sbr.rel (0) target = $region65
    $region64: #{tpu_custom_call.1} parent=1 // pred_region
      %340 = dma.done [#allocation5], 128
    $region65: #{tpu_custom_call.1} parent=1 // pred_fallthru
      _
    %341 = vsyncpa [#allocation4], 1
    %342 = vsyncpa [#allocation7], 1
    %343 = vsyncpa [#allocation10], 1
    %344 = vsyncpa [#allocation5], 1

</llo_original>
